<compile_context>
chip_gen: v5e
topology: v5e:2x2
jax: 0.10.0
libtpu: 0.0.40
codegen_flags: <defaults>
</compile_context>

<pallas_src>
import jax
import jax.numpy as jnp
from jax.experimental import pallas as pl
from jax.experimental.pallas import tpu as pltpu

# ---- small synthetic Llama-like config (shapes follow the module's __init__) ----
VOCAB = 256
HIDDEN = 128
N_HEADS = 4
N_KV_HEADS = 2
HEAD_DIM = HIDDEN // N_HEADS          # 32
N_REP = N_HEADS // N_KV_HEADS         # GQA repeat factor
ROPE_THETA = 10000.0
SCALING = HEAD_DIM ** -0.5
BATCH = 2
SEQ = 8


def attn_kernel(x_ref, wqkv_ref, wo_ref, cos_ref, sin_ref, out_ref, w_ref):
    """One grid step == one batch element.

    x_ref   : (SEQ, HIDDEN)                  current batch's hidden states
    wqkv_ref: (HIDDEN, 5*HIDDEN)             [wq | wq@rot | wk | wk@rot | wv]
    wo_ref  : (N_HEADS, HEAD_DIM, HIDDEN)    o_proj split per head
    cos_ref : (SEQ, HIDDEN)  pre-tiled per head
    sin_ref : (SEQ, HIDDEN)
    out_ref : (SEQ, HIDDEN)
    w_ref   : (N_HEADS, SEQ, SEQ)            attention weights (batch dim squeezed)
    """
    x = x_ref[...]
    cos = cos_ref[...]
    sin = sin_ref[...]

    # One wide MXU matmul for all projections (wq already scaled, wk/wv already
    # GQA-repeated, rotate_half pre-folded into the *_rot columns).
    qkv = jnp.dot(x, wqkv_ref[...], preferred_element_type=jnp.float32)  # (S, 5H)

    # 128-lane-aligned slices of the fused result (layout-free).
    q_lin = qkv[:, 0 * HIDDEN:1 * HIDDEN]
    q_rot = qkv[:, 1 * HIDDEN:2 * HIDDEN]
    k_lin = qkv[:, 2 * HIDDEN:3 * HIDDEN]
    k_rot = qkv[:, 3 * HIDDEN:4 * HIDDEN]
    v = qkv[:, 4 * HIDDEN:5 * HIDDEN]

    # Full-width RoPE: pure VPU (rotate_half already folded into the weights).
    q = q_lin * cos + q_rot * sin
    k = k_lin * cos + k_rot * sin

    acc = jnp.zeros((SEQ, HIDDEN), jnp.float32)
    for h in range(N_HEADS):            # static loop, 4 heads
        lo = h * HEAD_DIM
        qh = q[:, lo:lo + HEAD_DIM]     # (S, Dh) 2-D, native layout
        kh = k[:, lo:lo + HEAD_DIM]
        vh = v[:, lo:lo + HEAD_DIM]

        # attention_mask=None in the reference forward -> no mask added.
        s = jax.lax.dot_general(qh, kh, (((1,), (1,)), ((), ())),
                                preferred_element_type=jnp.float32)     # (S, S)
        m = jnp.max(s, axis=-1, keepdims=True)
        e = jnp.exp(s - m)
        w = e * pl.reciprocal(jnp.sum(e, axis=-1, keepdims=True))       # exact recip
        w_ref[h] = w                    # leading-dim store, no stack relayout

        ctx = jnp.dot(w, vh, preferred_element_type=jnp.float32)        # (S, Dh)
        # o_proj accumulated per head: avoids the 4x32-lane concat.
        acc = acc + jnp.dot(ctx, wo_ref[h], preferred_element_type=jnp.float32)

    out_ref[...] = acc


def llama_attention_pallas(x2d, w_all, wo_heads, cos, sin):
    """x2d: (B*S, H); w_all: (H, 5H); wo_heads: (NH, Dh, H); cos/sin: (S, H)."""
    out_shape = (
        jax.ShapeDtypeStruct((BATCH * SEQ, HIDDEN), jnp.float32),
        jax.ShapeDtypeStruct((BATCH, N_HEADS, SEQ, SEQ), jnp.float32),
    )
    grid_spec = pltpu.PrefetchScalarGridSpec(
        num_scalar_prefetch=0,
        grid=(BATCH,),
        in_specs=[
            pl.BlockSpec((SEQ, HIDDEN), lambda b: (b, 0)),                  # x rows
            pl.BlockSpec((HIDDEN, 5 * HIDDEN), lambda b: (0, 0)),           # fused W
            pl.BlockSpec((N_HEADS, HEAD_DIM, HIDDEN), lambda b: (0, 0, 0)),  # wo
            pl.BlockSpec((SEQ, HIDDEN), lambda b: (0, 0)),                  # cos
            pl.BlockSpec((SEQ, HIDDEN), lambda b: (0, 0)),                  # sin
        ],
        out_specs=(
            pl.BlockSpec((SEQ, HIDDEN), lambda b: (b, 0)),
            pl.BlockSpec((None, N_HEADS, SEQ, SEQ), lambda b: (b, 0, 0, 0)),
        ),
    )
    return pl.pallas_call(
        attn_kernel,
        out_shape=out_shape,
        grid_spec=grid_spec,
        compiler_params=pltpu.CompilerParams(
            dimension_semantics=("parallel",)),   # uses both TCs on v7x
    )(x2d, w_all, wo_heads, cos, sin)


def rotary_cos_sin(seq_len):
    inv_freq = 1.0 / (ROPE_THETA ** (jnp.arange(0, HEAD_DIM, 2, dtype=jnp.float32)
                                     / HEAD_DIM))
    pos = jnp.arange(seq_len, dtype=jnp.float32)           # position_ids = arange(S)
    freqs = pos[:, None] * inv_freq[None, :]                # (S, Dh/2)
    emb = jnp.concatenate([freqs, freqs], axis=-1)          # (S, Dh)
    return jnp.cos(emb), jnp.sin(emb)                       # attention_scaling = 1.0


def rotate_half_matrix():
    """(H, H) block-diagonal signed permutation with t @ P == rotate_half(t)."""
    half = HEAD_DIM // 2
    idx = jnp.arange(half)
    blk = jnp.zeros((HEAD_DIM, HEAD_DIM), jnp.float32)
    blk = blk.at[idx + half, idx].set(-1.0)   # out[:, j<half]  = -t[:, j+half]
    blk = blk.at[idx, idx + half].set(1.0)    # out[:, j>=half] =  t[:, j-half]
    return jnp.kron(jnp.eye(N_HEADS, dtype=jnp.float32), blk)


def prepare_weights(wq, wk, wv, wo):
    """torch nn.Linear stores (out, in); kernel consumes (in, out).

    One-time transforms: fold softmax scaling into wq, fold the GQA repeat_kv
    into wk/wv, fold rotate_half into the *_rot columns, and fuse everything
    into a single (H, 5H) projection weight.
    """
    rot = rotate_half_matrix()
    wq_t = (wq * SCALING).T                                          # (H, H)
    wk_rep = jnp.repeat(wk.reshape(N_KV_HEADS, HEAD_DIM, HIDDEN), N_REP, axis=0)
    wv_rep = jnp.repeat(wv.reshape(N_KV_HEADS, HEAD_DIM, HIDDEN), N_REP, axis=0)
    wk_t = wk_rep.reshape(N_HEADS * HEAD_DIM, HIDDEN).T              # (H, H)
    wv_t = wv_rep.reshape(N_HEADS * HEAD_DIM, HIDDEN).T              # (H, H)
    w_all = jnp.concatenate(
        [wq_t, wq_t @ rot, wk_t, wk_t @ rot, wv_t], axis=1)          # (H, 5H)
    wo_heads = wo.T.reshape(N_HEADS, HEAD_DIM, HIDDEN)               # (NH, Dh, H)
    return w_all, wo_heads


def _net_forward_impl(tokens, embed_table, wq, wk, wv, wo):
    # embedding lookup (glue; gather has no rectangular BlockSpec form here)
    hidden = embed_table[tokens].reshape(BATCH * SEQ, HIDDEN)        # (B*S, H)
    cos_dh, sin_dh = rotary_cos_sin(SEQ)
    cos = jnp.tile(cos_dh, (1, N_HEADS))                             # (S, H)
    sin = jnp.tile(sin_dh, (1, N_HEADS))
    w_all, wo_heads = prepare_weights(wq, wk, wv, wo)
    out2d, attn_w = llama_attention_pallas(hidden, w_all, wo_heads, cos, sin)
    return out2d.reshape(BATCH, SEQ, HIDDEN), attn_w


# jit so the one-time weight/rope prep is compiled & fused with the call.
net_forward = jax.jit(_net_forward_impl)


def net_forward_ref(tokens, embed_table, wq, wk, wv, wo):
    """Pure-JAX reference mirroring HF LlamaAttention eager path."""
    hidden = embed_table[tokens]                           # (B, S, H)
    cos, sin = rotary_cos_sin(SEQ)
    q = hidden @ wq.T                                      # (B, S, NH*Dh)
    k = hidden @ wk.T                                      # (B, S, NKV*Dh)
    v = hidden @ wv.T
    q = q.reshape(BATCH, SEQ, N_HEADS, HEAD_DIM).transpose(0, 2, 1, 3)
    k = k.reshape(BATCH, SEQ, N_KV_HEADS, HEAD_DIM).transpose(0, 2, 1, 3)
    v = v.reshape(BATCH, SEQ, N_KV_HEADS, HEAD_DIM).transpose(0, 2, 1, 3)

    def rope4(t):
        half = HEAD_DIM // 2
        rot = jnp.concatenate([-t[..., half:], t[..., :half]], axis=-1)
        return t * cos[None, None] + rot * sin[None, None]

    q, k = rope4(q), rope4(k)
    k = jnp.repeat(k, N_REP, axis=1)
    v = jnp.repeat(v, N_REP, axis=1)
    scores = jnp.einsum("bhqd,bhkd->bhqk", q, k) * SCALING
    w = jax.nn.softmax(scores, axis=-1)
    ctx = jnp.einsum("bhqk,bhkd->bhqd", w, v)
    ctx = ctx.transpose(0, 2, 1, 3).reshape(BATCH, SEQ, N_HEADS * HEAD_DIM)
    return ctx @ wo.T, w


if __name__ == "__main__":
    key = jax.random.PRNGKey(0)
    k_tok, k_emb, k_q, k_k, k_v, k_o = jax.random.split(key, 6)

    tokens = jax.random.randint(k_tok, (BATCH, SEQ), 0, VOCAB, dtype=jnp.int32)
    embed_table = 0.02 * jax.random.normal(k_emb, (VOCAB, HIDDEN), jnp.float32)
    # torch nn.Linear weight shapes: (out_features, in_features), bias=False
    wq = 0.02 * jax.random.normal(k_q, (N_HEADS * HEAD_DIM, HIDDEN), jnp.float32)
    wk = 0.02 * jax.random.normal(k_k, (N_KV_HEADS * HEAD_DIM, HIDDEN), jnp.float32)
    wv = 0.02 * jax.random.normal(k_v, (N_KV_HEADS * HEAD_DIM, HIDDEN), jnp.float32)
    wo = 0.02 * jax.random.normal(k_o, (HIDDEN, N_HEADS * HEAD_DIM), jnp.float32)

    attn_out, attn_w = net_forward(tokens, embed_table, wq, wk, wv, wo)
    jax.block_until_ready((attn_out, attn_w))

    ref_out, ref_w = net_forward_ref(tokens, embed_table, wq, wk, wv, wo)
    assert attn_out.shape == (BATCH, SEQ, HIDDEN)
    assert attn_w.shape == (BATCH, N_HEADS, SEQ, SEQ)
    assert jnp.allclose(attn_out, ref_out, atol=1e-5, rtol=1e-5)
    assert jnp.allclose(attn_w, ref_w, atol=1e-5, rtol=1e-5)

    print("KERNEL_OK")
</pallas_src>

<mosaic_0001>
module attributes {stable_mosaic.version = 11 : i64} {
  func.func @attn_kernel(%arg0: i32, %arg1: memref<8x128xf32, #tpu.memory_space<vmem>>, %arg2: memref<128x640xf32, #tpu.memory_space<vmem>>, %arg3: memref<4x32x128xf32, #tpu.memory_space<vmem>>, %arg4: memref<8x128xf32, #tpu.memory_space<vmem>>, %arg5: memref<8x128xf32, #tpu.memory_space<vmem>>, %arg6: memref<8x128xf32, #tpu.memory_space<vmem>>, %arg7: memref<1x4x8x8xf32, #tpu.memory_space<vmem>>) attributes {dimension_semantics = [#tpu.dimension_semantics<parallel>], iteration_bounds = array<i64: 2>, scalar_prefetch = 0 : i64, scratch_operands = 0 : i64, tpu.core_type = #tpu.core_type<tc>, window_params = [{transform_indices = @transform_0, window_bounds = array<i64: 8, 128>}, {pipeline_mode = #tpu.pipeline_mode<synchronous>, transform_indices = @transform_1, window_bounds = array<i64: 128, 640>}, {pipeline_mode = #tpu.pipeline_mode<synchronous>, transform_indices = @transform_2, window_bounds = array<i64: 4, 32, 128>}, {pipeline_mode = #tpu.pipeline_mode<synchronous>, transform_indices = @transform_3, window_bounds = array<i64: 8, 128>}, {pipeline_mode = #tpu.pipeline_mode<synchronous>, transform_indices = @transform_4, window_bounds = array<i64: 8, 128>}, {transform_indices = @transform_5, window_bounds = array<i64: 8, 128>}, {transform_indices = @transform_6, window_bounds = array<i64: 1, 4, 8, 8>}]} {
    %c0 = arith.constant 0 : index
    %c0_0 = arith.constant 0 : index
    %0 = vector.load %arg1[%c0, %c0_0] : memref<8x128xf32, #tpu.memory_space<vmem>>, vector<8x128xf32>
    %c0_1 = arith.constant 0 : index
    %c0_2 = arith.constant 0 : index
    %1 = vector.load %arg4[%c0_1, %c0_2] : memref<8x128xf32, #tpu.memory_space<vmem>>, vector<8x128xf32>
    %c0_3 = arith.constant 0 : index
    %c0_4 = arith.constant 0 : index
    %2 = vector.load %arg5[%c0_3, %c0_4] : memref<8x128xf32, #tpu.memory_space<vmem>>, vector<8x128xf32>
    %c0_5 = arith.constant 0 : index
    %c0_6 = arith.constant 0 : index
    %3 = vector.load %arg2[%c0_5, %c0_6] : memref<128x640xf32, #tpu.memory_space<vmem>>, vector<128x640xf32>
    %cst = arith.constant dense<0.000000e+00> : vector<8x640xf32>
    %4 = tpu.matmul %0, %3, %cst {dimension_numbers = #tpu.dot_dimension_numbers<[1], [0], [0], [1], [0, 0, 1, 1], [], []>} : vector<8x128xf32>, vector<128x640xf32>, vector<8x640xf32> -> vector<8x640xf32>
    %5 = vector.extract_strided_slice %4 {offsets = [0, 0], sizes = [8, 128], strides = [1, 1]} : vector<8x640xf32> to vector<8x128xf32>
    %6 = vector.extract_strided_slice %4 {offsets = [0, 128], sizes = [8, 128], strides = [1, 1]} : vector<8x640xf32> to vector<8x128xf32>
    %7 = vector.extract_strided_slice %4 {offsets = [0, 256], sizes = [8, 128], strides = [1, 1]} : vector<8x640xf32> to vector<8x128xf32>
    %8 = vector.extract_strided_slice %4 {offsets = [0, 384], sizes = [8, 128], strides = [1, 1]} : vector<8x640xf32> to vector<8x128xf32>
    %9 = vector.extract_strided_slice %4 {offsets = [0, 512], sizes = [8, 128], strides = [1, 1]} : vector<8x640xf32> to vector<8x128xf32>
    %10 = arith.mulf %5, %1 : vector<8x128xf32>
    %11 = arith.mulf %6, %2 : vector<8x128xf32>
    %12 = arith.addf %10, %11 : vector<8x128xf32>
    %13 = arith.mulf %7, %1 : vector<8x128xf32>
    %14 = arith.mulf %8, %2 : vector<8x128xf32>
    %15 = arith.addf %13, %14 : vector<8x128xf32>
    %cst_7 = arith.constant 0.000000e+00 : f32
    %16 = vector.broadcast %cst_7 : f32 to vector<8x128xf32>
    %17 = vector.extract_strided_slice %12 {offsets = [0, 0], sizes = [8, 32], strides = [1, 1]} : vector<8x128xf32> to vector<8x32xf32>
    %18 = vector.extract_strided_slice %15 {offsets = [0, 0], sizes = [8, 32], strides = [1, 1]} : vector<8x128xf32> to vector<8x32xf32>
    %19 = vector.extract_strided_slice %9 {offsets = [0, 0], sizes = [8, 32], strides = [1, 1]} : vector<8x128xf32> to vector<8x32xf32>
    %cst_8 = arith.constant dense<0.000000e+00> : vector<8x8xf32>
    %20 = tpu.matmul %17, %18, %cst_8 {dimension_numbers = #tpu.dot_dimension_numbers<[1], [1], [0], [0], [0, 0, 1, 0], [], []>} : vector<8x32xf32>, vector<8x32xf32>, vector<8x8xf32> -> vector<8x8xf32>
    %cst_9 = arith.constant dense<0xFF800000> : vector<8xf32>
    %21 = vector.multi_reduction <maximumf>, %20, %cst_9 [1] : vector<8x8xf32> to vector<8xf32>
    %22 = vector.shape_cast %21 : vector<8xf32> to vector<8x1xf32>
    %23 = vector.broadcast %22 : vector<8x1xf32> to vector<8x8xf32>
    %24 = arith.subf %20, %23 : vector<8x8xf32>
    %25 = math.exp %24 : vector<8x8xf32>
    %cst_10 = arith.constant dense<0.000000e+00> : vector<8xf32>
    %26 = vector.multi_reduction <add>, %25, %cst_10 [1] : vector<8x8xf32> to vector<8xf32>
    %27 = vector.shape_cast %26 : vector<8xf32> to vector<8x1xf32>
    %28 = tpu.reciprocal %27 : vector<8x1xf32> -> vector<8x1xf32>
    %29 = vector.broadcast %28 : vector<8x1xf32> to vector<8x8xf32>
    %30 = arith.mulf %25, %29 : vector<8x8xf32>
    %c0_11 = arith.constant 0 : index
    %c0_12 = arith.constant 0 : index
    %c0_13 = arith.constant 0 : index
    %c0_14 = arith.constant 0 : index
    %31 = vector.load %arg7[%c0_11, %c0_12, %c0_13, %c0_14] : memref<1x4x8x8xf32, #tpu.memory_space<vmem>>, vector<1x1x8x8xf32>
    %32 = vector.shape_cast %31 : vector<1x1x8x8xf32> to vector<8x8xf32>
    %33 = vector.shape_cast %30 : vector<8x8xf32> to vector<1x1x8x8xf32>
    tpu.vector_store %arg7[%c0_11, %c0_12, %c0_13, %c0_14], %33 {strides = array<i32>} : memref<1x4x8x8xf32, #tpu.memory_space<vmem>>, vector<1x1x8x8xf32>,
    %cst_15 = arith.constant dense<0.000000e+00> : vector<8x32xf32>
    %34 = tpu.matmul %30, %19, %cst_15 {dimension_numbers = #tpu.dot_dimension_numbers<[1], [0], [0], [1], [0, 0, 1, 1], [], []>} : vector<8x8xf32>, vector<8x32xf32>, vector<8x32xf32> -> vector<8x32xf32>
    %c0_16 = arith.constant 0 : index
    %c0_17 = arith.constant 0 : index
    %c0_18 = arith.constant 0 : index
    %35 = vector.load %arg3[%c0_16, %c0_17, %c0_18] : memref<4x32x128xf32, #tpu.memory_space<vmem>>, vector<1x32x128xf32>
    %36 = vector.shape_cast %35 : vector<1x32x128xf32> to vector<32x128xf32>
    %cst_19 = arith.constant dense<0.000000e+00> : vector<8x128xf32>
    %37 = tpu.matmul %34, %36, %cst_19 {dimension_numbers = #tpu.dot_dimension_numbers<[1], [0], [0], [1], [0, 0, 1, 1], [], []>} : vector<8x32xf32>, vector<32x128xf32>, vector<8x128xf32> -> vector<8x128xf32>
    %38 = arith.addf %16, %37 : vector<8x128xf32>
    %39 = vector.extract_strided_slice %12 {offsets = [0, 32], sizes = [8, 32], strides = [1, 1]} : vector<8x128xf32> to vector<8x32xf32>
    %40 = vector.extract_strided_slice %15 {offsets = [0, 32], sizes = [8, 32], strides = [1, 1]} : vector<8x128xf32> to vector<8x32xf32>
    %41 = vector.extract_strided_slice %9 {offsets = [0, 32], sizes = [8, 32], strides = [1, 1]} : vector<8x128xf32> to vector<8x32xf32>
    %cst_20 = arith.constant dense<0.000000e+00> : vector<8x8xf32>
    %42 = tpu.matmul %39, %40, %cst_20 {dimension_numbers = #tpu.dot_dimension_numbers<[1], [1], [0], [0], [0, 0, 1, 0], [], []>} : vector<8x32xf32>, vector<8x32xf32>, vector<8x8xf32> -> vector<8x8xf32>
    %cst_21 = arith.constant dense<0xFF800000> : vector<8xf32>
    %43 = vector.multi_reduction <maximumf>, %42, %cst_21 [1] : vector<8x8xf32> to vector<8xf32>
    %44 = vector.shape_cast %43 : vector<8xf32> to vector<8x1xf32>
    %45 = vector.broadcast %44 : vector<8x1xf32> to vector<8x8xf32>
    %46 = arith.subf %42, %45 : vector<8x8xf32>
    %47 = math.exp %46 : vector<8x8xf32>
    %cst_22 = arith.constant dense<0.000000e+00> : vector<8xf32>
    %48 = vector.multi_reduction <add>, %47, %cst_22 [1] : vector<8x8xf32> to vector<8xf32>
    %49 = vector.shape_cast %48 : vector<8xf32> to vector<8x1xf32>
    %50 = tpu.reciprocal %49 : vector<8x1xf32> -> vector<8x1xf32>
    %51 = vector.broadcast %50 : vector<8x1xf32> to vector<8x8xf32>
    %52 = arith.mulf %47, %51 : vector<8x8xf32>
    %c0_23 = arith.constant 0 : index
    %c1 = arith.constant 1 : index
    %c0_24 = arith.constant 0 : index
    %c0_25 = arith.constant 0 : index
    %53 = vector.load %arg7[%c0_23, %c1, %c0_24, %c0_25] : memref<1x4x8x8xf32, #tpu.memory_space<vmem>>, vector<1x1x8x8xf32>
    %54 = vector.shape_cast %53 : vector<1x1x8x8xf32> to vector<8x8xf32>
    %55 = vector.shape_cast %52 : vector<8x8xf32> to vector<1x1x8x8xf32>
    tpu.vector_store %arg7[%c0_23, %c1, %c0_24, %c0_25], %55 {strides = array<i32>} : memref<1x4x8x8xf32, #tpu.memory_space<vmem>>, vector<1x1x8x8xf32>,
    %cst_26 = arith.constant dense<0.000000e+00> : vector<8x32xf32>
    %56 = tpu.matmul %52, %41, %cst_26 {dimension_numbers = #tpu.dot_dimension_numbers<[1], [0], [0], [1], [0, 0, 1, 1], [], []>} : vector<8x8xf32>, vector<8x32xf32>, vector<8x32xf32> -> vector<8x32xf32>
    %c1_27 = arith.constant 1 : index
    %c0_28 = arith.constant 0 : index
    %c0_29 = arith.constant 0 : index
    %57 = vector.load %arg3[%c1_27, %c0_28, %c0_29] : memref<4x32x128xf32, #tpu.memory_space<vmem>>, vector<1x32x128xf32>
    %58 = vector.shape_cast %57 : vector<1x32x128xf32> to vector<32x128xf32>
    %cst_30 = arith.constant dense<0.000000e+00> : vector<8x128xf32>
    %59 = tpu.matmul %56, %58, %cst_30 {dimension_numbers = #tpu.dot_dimension_numbers<[1], [0], [0], [1], [0, 0, 1, 1], [], []>} : vector<8x32xf32>, vector<32x128xf32>, vector<8x128xf32> -> vector<8x128xf32>
    %60 = arith.addf %38, %59 : vector<8x128xf32>
    %61 = vector.extract_strided_slice %12 {offsets = [0, 64], sizes = [8, 32], strides = [1, 1]} : vector<8x128xf32> to vector<8x32xf32>
    %62 = vector.extract_strided_slice %15 {offsets = [0, 64], sizes = [8, 32], strides = [1, 1]} : vector<8x128xf32> to vector<8x32xf32>
    %63 = vector.extract_strided_slice %9 {offsets = [0, 64], sizes = [8, 32], strides = [1, 1]} : vector<8x128xf32> to vector<8x32xf32>
    %cst_31 = arith.constant dense<0.000000e+00> : vector<8x8xf32>
    %64 = tpu.matmul %61, %62, %cst_31 {dimension_numbers = #tpu.dot_dimension_numbers<[1], [1], [0], [0], [0, 0, 1, 0], [], []>} : vector<8x32xf32>, vector<8x32xf32>, vector<8x8xf32> -> vector<8x8xf32>
    %cst_32 = arith.constant dense<0xFF800000> : vector<8xf32>
    %65 = vector.multi_reduction <maximumf>, %64, %cst_32 [1] : vector<8x8xf32> to vector<8xf32>
    %66 = vector.shape_cast %65 : vector<8xf32> to vector<8x1xf32>
    %67 = vector.broadcast %66 : vector<8x1xf32> to vector<8x8xf32>
    %68 = arith.subf %64, %67 : vector<8x8xf32>
    %69 = math.exp %68 : vector<8x8xf32>
    %cst_33 = arith.constant dense<0.000000e+00> : vector<8xf32>
    %70 = vector.multi_reduction <add>, %69, %cst_33 [1] : vector<8x8xf32> to vector<8xf32>
    %71 = vector.shape_cast %70 : vector<8xf32> to vector<8x1xf32>
    %72 = tpu.reciprocal %71 : vector<8x1xf32> -> vector<8x1xf32>
    %73 = vector.broadcast %72 : vector<8x1xf32> to vector<8x8xf32>
    %74 = arith.mulf %69, %73 : vector<8x8xf32>
    %c0_34 = arith.constant 0 : index
    %c2 = arith.constant 2 : index
    %c0_35 = arith.constant 0 : index
    %c0_36 = arith.constant 0 : index
    %75 = vector.load %arg7[%c0_34, %c2, %c0_35, %c0_36] : memref<1x4x8x8xf32, #tpu.memory_space<vmem>>, vector<1x1x8x8xf32>
    %76 = vector.shape_cast %75 : vector<1x1x8x8xf32> to vector<8x8xf32>
    %77 = vector.shape_cast %74 : vector<8x8xf32> to vector<1x1x8x8xf32>
    tpu.vector_store %arg7[%c0_34, %c2, %c0_35, %c0_36], %77 {strides = array<i32>} : memref<1x4x8x8xf32, #tpu.memory_space<vmem>>, vector<1x1x8x8xf32>,
    %cst_37 = arith.constant dense<0.000000e+00> : vector<8x32xf32>
    %78 = tpu.matmul %74, %63, %cst_37 {dimension_numbers = #tpu.dot_dimension_numbers<[1], [0], [0], [1], [0, 0, 1, 1], [], []>} : vector<8x8xf32>, vector<8x32xf32>, vector<8x32xf32> -> vector<8x32xf32>
    %c2_38 = arith.constant 2 : index
    %c0_39 = arith.constant 0 : index
    %c0_40 = arith.constant 0 : index
    %79 = vector.load %arg3[%c2_38, %c0_39, %c0_40] : memref<4x32x128xf32, #tpu.memory_space<vmem>>, vector<1x32x128xf32>
    %80 = vector.shape_cast %79 : vector<1x32x128xf32> to vector<32x128xf32>
    %cst_41 = arith.constant dense<0.000000e+00> : vector<8x128xf32>
    %81 = tpu.matmul %78, %80, %cst_41 {dimension_numbers = #tpu.dot_dimension_numbers<[1], [0], [0], [1], [0, 0, 1, 1], [], []>} : vector<8x32xf32>, vector<32x128xf32>, vector<8x128xf32> -> vector<8x128xf32>
    %82 = arith.addf %60, %81 : vector<8x128xf32>
    %83 = vector.extract_strided_slice %12 {offsets = [0, 96], sizes = [8, 32], strides = [1, 1]} : vector<8x128xf32> to vector<8x32xf32>
    %84 = vector.extract_strided_slice %15 {offsets = [0, 96], sizes = [8, 32], strides = [1, 1]} : vector<8x128xf32> to vector<8x32xf32>
    %85 = vector.extract_strided_slice %9 {offsets = [0, 96], sizes = [8, 32], strides = [1, 1]} : vector<8x128xf32> to vector<8x32xf32>
    %cst_42 = arith.constant dense<0.000000e+00> : vector<8x8xf32>
    %86 = tpu.matmul %83, %84, %cst_42 {dimension_numbers = #tpu.dot_dimension_numbers<[1], [1], [0], [0], [0, 0, 1, 0], [], []>} : vector<8x32xf32>, vector<8x32xf32>, vector<8x8xf32> -> vector<8x8xf32>
    %cst_43 = arith.constant dense<0xFF800000> : vector<8xf32>
    %87 = vector.multi_reduction <maximumf>, %86, %cst_43 [1] : vector<8x8xf32> to vector<8xf32>
    %88 = vector.shape_cast %87 : vector<8xf32> to vector<8x1xf32>
    %89 = vector.broadcast %88 : vector<8x1xf32> to vector<8x8xf32>
    %90 = arith.subf %86, %89 : vector<8x8xf32>
    %91 = math.exp %90 : vector<8x8xf32>
    %cst_44 = arith.constant dense<0.000000e+00> : vector<8xf32>
    %92 = vector.multi_reduction <add>, %91, %cst_44 [1] : vector<8x8xf32> to vector<8xf32>
    %93 = vector.shape_cast %92 : vector<8xf32> to vector<8x1xf32>
    %94 = tpu.reciprocal %93 : vector<8x1xf32> -> vector<8x1xf32>
    %95 = vector.broadcast %94 : vector<8x1xf32> to vector<8x8xf32>
    %96 = arith.mulf %91, %95 : vector<8x8xf32>
    %c0_45 = arith.constant 0 : index
    %c3 = arith.constant 3 : index
    %c0_46 = arith.constant 0 : index
    %c0_47 = arith.constant 0 : index
    %97 = vector.load %arg7[%c0_45, %c3, %c0_46, %c0_47] : memref<1x4x8x8xf32, #tpu.memory_space<vmem>>, vector<1x1x8x8xf32>
    %98 = vector.shape_cast %97 : vector<1x1x8x8xf32> to vector<8x8xf32>
    %99 = vector.shape_cast %96 : vector<8x8xf32> to vector<1x1x8x8xf32>
    tpu.vector_store %arg7[%c0_45, %c3, %c0_46, %c0_47], %99 {strides = array<i32>} : memref<1x4x8x8xf32, #tpu.memory_space<vmem>>, vector<1x1x8x8xf32>,
    %cst_48 = arith.constant dense<0.000000e+00> : vector<8x32xf32>
    %100 = tpu.matmul %96, %85, %cst_48 {dimension_numbers = #tpu.dot_dimension_numbers<[1], [0], [0], [1], [0, 0, 1, 1], [], []>} : vector<8x8xf32>, vector<8x32xf32>, vector<8x32xf32> -> vector<8x32xf32>
    %c3_49 = arith.constant 3 : index
    %c0_50 = arith.constant 0 : index
    %c0_51 = arith.constant 0 : index
    %101 = vector.load %arg3[%c3_49, %c0_50, %c0_51] : memref<4x32x128xf32, #tpu.memory_space<vmem>>, vector<1x32x128xf32>
    %102 = vector.shape_cast %101 : vector<1x32x128xf32> to vector<32x128xf32>
    %cst_52 = arith.constant dense<0.000000e+00> : vector<8x128xf32>
    %103 = tpu.matmul %100, %102, %cst_52 {dimension_numbers = #tpu.dot_dimension_numbers<[1], [0], [0], [1], [0, 0, 1, 1], [], []>} : vector<8x32xf32>, vector<32x128xf32>, vector<8x128xf32> -> vector<8x128xf32>
    %104 = arith.addf %82, %103 : vector<8x128xf32>
    %c0_53 = arith.constant 0 : index
    %c0_54 = arith.constant 0 : index
    %105 = vector.load %arg6[%c0_53, %c0_54] : memref<8x128xf32, #tpu.memory_space<vmem>>, vector<8x128xf32>
    tpu.vector_store %arg6[%c0_53, %c0_54], %104 {strides = array<i32>} : memref<8x128xf32, #tpu.memory_space<vmem>>, vector<8x128xf32>,
    return
  }
  func.func @transform_0(%arg0: i32) -> (i32, i32) {
    %c0_i32 = arith.constant 0 : i32
    %c0_i32_0 = arith.constant 0 : i32
    return %arg0, %c0_i32 : i32, i32
  }
  func.func @transform_1(%arg0: i32) -> (i32, i32) {
    %c0_i32 = arith.constant 0 : i32
    %c0_i32_0 = arith.constant 0 : i32
    %c0_i32_1 = arith.constant 0 : i32
    return %c0_i32, %c0_i32_0 : i32, i32
  }
  func.func @transform_2(%arg0: i32) -> (i32, i32, i32) {
    %c0_i32 = arith.constant 0 : i32
    %c0_i32_0 = arith.constant 0 : i32
    %c0_i32_1 = arith.constant 0 : i32
    %c0_i32_2 = arith.constant 0 : i32
    return %c0_i32, %c0_i32_0, %c0_i32_1 : i32, i32, i32
  }
  func.func @transform_3(%arg0: i32) -> (i32, i32) {
    %c0_i32 = arith.constant 0 : i32
    %c0_i32_0 = arith.constant 0 : i32
    %c0_i32_1 = arith.constant 0 : i32
    return %c0_i32, %c0_i32_0 : i32, i32
  }
  func.func @transform_4(%arg0: i32) -> (i32, i32) {
    %c0_i32 = arith.constant 0 : i32
    %c0_i32_0 = arith.constant 0 : i32
    %c0_i32_1 = arith.constant 0 : i32
    return %c0_i32, %c0_i32_0 : i32, i32
  }
  func.func @transform_5(%arg0: i32) -> (i32, i32) {
    %c0_i32 = arith.constant 0 : i32
    %c0_i32_0 = arith.constant 0 : i32
    return %arg0, %c0_i32 : i32, i32
  }
  func.func @transform_6(%arg0: i32) -> (i32, i32, i32, i32) {
    %c0_i32 = arith.constant 0 : i32
    %c0_i32_0 = arith.constant 0 : i32
    %c0_i32_1 = arith.constant 0 : i32
    %c0_i32_2 = arith.constant 0 : i32
    return %arg0, %c0_i32, %c0_i32_0, %c0_i32_1 : i32, i32, i32, i32
  }
}

</mosaic_0001>

<llo_original>
// kernel: tile.14
$region0: #{tile.14}
  %s0 = inlined_call_operand.vmem [shape: f32[8,4,32], index: 0, kind: input, shape index: {}]
  %s1 = inlined_call_operand.vmem [shape: f32[8,128], index: 1, kind: output, shape index: {}]
  $region1: #{tile.14} parent=0
    #allocation0 [shape = 'u8[32768]{0}', space=vmem, size = 0x8000, scoped, tag = 'scoped mem for input reshape']
    %s3 = ssub.s32 16, 1
    %s4 = scalar_lea.vmem %s0, 28
    %v5 = vld [vmem:[%s4] sm:%s3]
    %s6 = scalar_lea.vmem [#allocation0], 56
    %7 = vst [vmem:[%s6] sm:%s3] %v5
    %s8 = scalar_lea.vmem %s0, 24
    %v9 = vld [vmem:[%s8] sm:%s3]
    %s10 = scalar_lea.vmem [#allocation0], 48
    %11 = vst [vmem:[%s10] sm:%s3] %v9
    %s12 = scalar_lea.vmem %s0, 20
    %v13 = vld [vmem:[%s12] sm:%s3]
    %s14 = scalar_lea.vmem [#allocation0], 40
    %15 = vst [vmem:[%s14] sm:%s3] %v13
    %s16 = scalar_lea.vmem %s0, 16
    %v17 = vld [vmem:[%s16] sm:%s3]
    %s18 = scalar_lea.vmem [#allocation0], 32
    %19 = vst [vmem:[%s18] sm:%s3] %v17
    %s20 = scalar_lea.vmem %s0, 12
    %v21 = vld [vmem:[%s20] sm:%s3]
    %s22 = scalar_lea.vmem [#allocation0], 24
    %23 = vst [vmem:[%s22] sm:%s3] %v21
    %s24 = scalar_lea.vmem %s0, 8
    %v25 = vld [vmem:[%s24] sm:%s3]
    %s26 = scalar_lea.vmem [#allocation0], 16
    %27 = vst [vmem:[%s26] sm:%s3] %v25
    %s28 = scalar_lea.vmem %s0, 4
    %v29 = vld [vmem:[%s28] sm:%s3]
    %s30 = scalar_lea.vmem [#allocation0], 8
    %31 = vst [vmem:[%s30] sm:%s3] %v29
    %v32 = vld [vmem:[%s0] sm:%s3]
    %33 = vst [vmem:[#allocation0] sm:%s3] %v32
    %v34 = vld [vmem:[#allocation0] ss:$8 sm:$0xf]
    %v35 = vld [vmem:[#allocation0] ss:$8 sm:$0xf0]
    %vm36 = vcmask 1047556
    %v37 = vsel %vm36, %v35, %v34
    %vm38 = vcmask 261120
    %39 = vst.msk [vmem:[%s1] sm:$0xff] %vm38, %v37
    %s40 = scalar_lea.vmem [#allocation0], 3
    %v41 = vld [vmem:[%s40] ss:$8 sm:$0xf]
    %s42 = scalar_lea.vmem [#allocation0], 3
    %v43 = vld [vmem:[%s42] ss:$8 sm:$0xf0]
    %vm44 = vcmask 1047556
    %v45 = vsel %vm44, %v43, %v41
    %46 = vrot.lane.b32.xlu0 %v45, 96
    %v47 = vpop.permute.xlu0 %46
    %vm48 = vcmask 1048320
    %49 = vst.msk [vmem:[%s1] sm:$0xff] %vm48, %v47
    %s50 = scalar_lea.vmem [#allocation0], 2
    %v51 = vld [vmem:[%s50] ss:$8 sm:$0xf]
    %s52 = scalar_lea.vmem [#allocation0], 2
    %v53 = vld [vmem:[%s52] ss:$8 sm:$0xf0]
    %vm54 = vcmask 1047556
    %v55 = vsel %vm54, %v53, %v51
    %56 = vrot.lane.b32.xlu0 %v55, 64
    %v57 = vpop.permute.xlu0 %56
    %vm58 = vcmask 785920
    %59 = vst.msk [vmem:[%s1] sm:$0xff] %vm58, %v57
    %s60 = scalar_lea.vmem [#allocation0], 1
    %v61 = vld [vmem:[%s60] ss:$8 sm:$0xf]
    %s62 = scalar_lea.vmem [#allocation0], 1
    %v63 = vld [vmem:[%s62] ss:$8 sm:$0xf0]
    %vm64 = vcmask 1047556
    %v65 = vsel %vm64, %v63, %v61
    %66 = vrot.lane.b32.xlu0 %v65, 32
    %v67 = vpop.permute.xlu0 %66
    %vm68 = vcmask 523520
    %69 = vst.msk [vmem:[%s1] sm:$0xff] %vm68, %v67

// kernel: _net_forward_impl.1
$region0: #{_net_forward_impl.1}
  #allocation0 [shape = 'u32[]', space=smem, size = 0x4, offset = 0x4, fixed_abs, tag = 'smem constant byte address 0x4 - core index']
  #allocation1 [shape = 'u32[72,128]{1,0:T(1,128)}', space=vmem, size = 0x9000, scoped, tag = 'internal scratch']
  %s0 = inlined_call_operand.vmem [shape: f32[16,128], index: 0, kind: input, shape index: {}]
  %s1 = inlined_call_operand.vmem [shape: f32[128,640], index: 1, kind: input, shape index: {}]
  %s2 = inlined_call_operand.vmem [shape: f32[4,32,128], index: 2, kind: input, shape index: {}]
  %s3 = inlined_call_operand.vmem [shape: f32[8,128], index: 3, kind: input, shape index: {}]
  %s4 = inlined_call_operand.vmem [shape: f32[8,128], index: 4, kind: input, shape index: {}]
  %s5 = inlined_call_operand.hbm [shape: f32[16,128], index: 5, kind: output, shape index: {0}]
  %s6 = inlined_call_operand.hbm [shape: f32[2,4,8,8], index: 6, kind: output, shape index: {1}]
  %7 = xla_tuple %s5, %s6
  %s8 = sld [smem:[#allocation0]]
  $region61: #{_net_forward_impl.1} parent=0
    _
  %s10 = ssub.s32 1, %s8
  %s11 = scalar_select 0, %s10, %s8
  $region1: #{_net_forward_impl.1} parent=0
    #allocation2 [shape = 'u8[8192]{0}', space=vmem, size = 0x2000, scoped, tag = 'output window, operand 0']
    #allocation3 [shape = 's32[2]{0}', space=sflag, size = 0x8, scoped, tag = 'scoped memory for _net_forward_impl.1']
    #allocation4 [shape = 'u8[32768]{0}', space=vmem, size = 0x8000, scoped, tag = 'output window, operand 1']
    #allocation5 [shape = 's32[2]{0}', space=sflag, size = 0x8, scoped, tag = 'scoped memory for _net_forward_impl.1']
    %12 = vsyncpa [#allocation3], 0
    %s13 = scalar_lea.sflag [#allocation3], 1
    %14 = vsyncpa %s13, 0
    %15 = vsyncpa [#allocation5], 0
    %s16 = scalar_lea.sflag [#allocation5], 1
    %17 = vsyncpa %s16, 0
    loop: start=0, step=1, limit=4
    $region2: #{_net_forward_impl.1} parent=1 // loop_pre_header
      _
    $region3: #{_net_forward_impl.1} parent=1 // loop_header
      %s19 = sphi 0, %s23
      %p20 = scmp.ge.s32.totalorder %s19, 4
      %s29 = sphi 0, %s31
      %s32 = sphi 0, %s29
      %s33 = sphi 0, %s32
      %s49 = sphi 0, %s33
      %s53 = sphi 0, %s53
      %s55 = sphi 0, %s53
      %s56 = sphi 0, %s55
      %s70 = sphi 0, %s56
      %s74 = sphi 0, %s74
      %s76 = sphi 0, %s74
      %s77 = sphi 0, %s76
      %s91 = sphi 0, %s77
      %s95 = sphi 0, %s95
      %s97 = sphi 0, %s95
      %s98 = sphi 0, %s97
      %s112 = sphi 0, %s98
      %s116 = sphi 0, %s116
      %s118 = sphi 0, %s116
      %s119 = sphi 0, %s118
      %s133 = sphi 0, %s119
      %s139 = sphi 0, %s141
      %s142 = sphi 0, %s139
      %s143 = sphi 0, %s142
      %s159 = sphi 0, %s143
      %s165 = sphi 0, %s167
      %s168 = sphi 0, %s165
      %s169 = sphi 0, %s168
      %s185 = sphi 0, %s169
    $region4: #{_net_forward_impl.1} parent=1 // loop_header_branch
      %22 = sbr.rel (%p20) target = $region8
    $region5: #{_net_forward_impl.1} parent=1 // loop_body
      %s24 = ssub.s32 %s19, 1
      %s25 = ssub.s32 %s19, 2
      %s26 = sadd.s32 %s19, 1
      %s27 = ssub.s32 %s19, %s26
      %p28 = scmp.eq.s32.totalorder %s27, 0
      %s30 = sadd.s32 %s29, 1
      %s31 = scalar_select %p28, %s29, %s30
      %p34 = pneg %p28
      %p35 = scmp.eq.s32.totalorder %s19, 1
      %p36 = por %p34, %p35
      %p37 = scmp.ne.s32.totalorder %s29, %s32
      %p38 = scmp.eq.s32.totalorder %s19, 0
      %p39 = por %p37, %p38
      %p40 = scmp.ne.s32.totalorder %s29, %s32
      %p41 = scmp.eq.s32.totalorder %s24, 1
      %p42 = por %p40, %p41
      %p43 = scmp.ne.s32.totalorder %s32, %s33
      %p44 = scmp.eq.s32.totalorder %s24, 0
      %p45 = por %p43, %p44
      %p46 = scmp.ne.s32.totalorder %s32, %s33
      %p47 = scmp.eq.s32.totalorder %s25, 1
      %p48 = por %p46, %p47
      %p50 = scmp.ne.s32.totalorder %s33, %s49
      %p51 = scmp.eq.s32.totalorder %s25, 0
      %p52 = por %p50, %p51
      %s54 = sadd.s32 %s53, 1
      %p57 = scmp.eq.s32.totalorder %s19, 1
      %p58 = scmp.ne.s32.totalorder %s53, %s55
      %p59 = scmp.eq.s32.totalorder %s19, 0
      %p60 = por %p58, %p59
      %p61 = scmp.ne.s32.totalorder %s53, %s55
      %p62 = scmp.eq.s32.totalorder %s24, 1
      %p63 = por %p61, %p62
      %p64 = scmp.ne.s32.totalorder %s55, %s56
      %p65 = scmp.eq.s32.totalorder %s24, 0
      %p66 = por %p64, %p65
      %p67 = scmp.ne.s32.totalorder %s55, %s56
      %p68 = scmp.eq.s32.totalorder %s25, 1
      %p69 = por %p67, %p68
      %p71 = scmp.ne.s32.totalorder %s56, %s70
      %p72 = scmp.eq.s32.totalorder %s25, 0
      %p73 = por %p71, %p72
      %s75 = sadd.s32 %s74, 1
      %p78 = scmp.eq.s32.totalorder %s19, 1
      %p79 = scmp.ne.s32.totalorder %s74, %s76
      %p80 = scmp.eq.s32.totalorder %s19, 0
      %p81 = por %p79, %p80
      %p82 = scmp.ne.s32.totalorder %s74, %s76
      %p83 = scmp.eq.s32.totalorder %s24, 1
      %p84 = por %p82, %p83
      %p85 = scmp.ne.s32.totalorder %s76, %s77
      %p86 = scmp.eq.s32.totalorder %s24, 0
      %p87 = por %p85, %p86
      %p88 = scmp.ne.s32.totalorder %s76, %s77
      %p89 = scmp.eq.s32.totalorder %s25, 1
      %p90 = por %p88, %p89
      %p92 = scmp.ne.s32.totalorder %s77, %s91
      %p93 = scmp.eq.s32.totalorder %s25, 0
      %p94 = por %p92, %p93
      %s96 = sadd.s32 %s95, 1
      %p99 = scmp.eq.s32.totalorder %s19, 1
      %p100 = scmp.ne.s32.totalorder %s95, %s97
      %p101 = scmp.eq.s32.totalorder %s19, 0
      %p102 = por %p100, %p101
      %p103 = scmp.ne.s32.totalorder %s95, %s97
      %p104 = scmp.eq.s32.totalorder %s24, 1
      %p105 = por %p103, %p104
      %p106 = scmp.ne.s32.totalorder %s97, %s98
      %p107 = scmp.eq.s32.totalorder %s24, 0
      %p108 = por %p106, %p107
      %p109 = scmp.ne.s32.totalorder %s97, %s98
      %p110 = scmp.eq.s32.totalorder %s25, 1
      %p111 = por %p109, %p110
      %p113 = scmp.ne.s32.totalorder %s98, %s112
      %p114 = scmp.eq.s32.totalorder %s25, 0
      %p115 = por %p113, %p114
      %s117 = sadd.s32 %s116, 1
      %p120 = scmp.eq.s32.totalorder %s19, 1
      %p121 = scmp.ne.s32.totalorder %s116, %s118
      %p122 = scmp.eq.s32.totalorder %s19, 0
      %p123 = por %p121, %p122
      %p124 = scmp.ne.s32.totalorder %s116, %s118
      %p125 = scmp.eq.s32.totalorder %s24, 1
      %p126 = por %p124, %p125
      %p127 = scmp.ne.s32.totalorder %s118, %s119
      %p128 = scmp.eq.s32.totalorder %s24, 0
      %p129 = por %p127, %p128
      %p130 = scmp.ne.s32.totalorder %s118, %s119
      %p131 = scmp.eq.s32.totalorder %s25, 1
      %p132 = por %p130, %p131
      %p134 = scmp.ne.s32.totalorder %s119, %s133
      %p135 = scmp.eq.s32.totalorder %s25, 0
      %p136 = por %p134, %p135
      %s137 = ssub.s32 %s19, %s26
      %p138 = scmp.eq.s32.totalorder %s137, 0
      %s140 = sadd.s32 %s139, 1
      %s141 = scalar_select %p138, %s139, %s140
      %p144 = pneg %p138
      %p145 = scmp.eq.s32.totalorder %s19, 1
      %p146 = por %p144, %p145
      %p147 = scmp.ne.s32.totalorder %s139, %s142
      %p148 = scmp.eq.s32.totalorder %s19, 0
      %p149 = por %p147, %p148
      %p150 = scmp.ne.s32.totalorder %s139, %s142
      %p151 = scmp.eq.s32.totalorder %s24, 1
      %p152 = por %p150, %p151
      %p153 = scmp.ne.s32.totalorder %s142, %s143
      %p154 = scmp.eq.s32.totalorder %s24, 0
      %p155 = por %p153, %p154
      %p156 = scmp.ne.s32.totalorder %s142, %s143
      %p157 = scmp.eq.s32.totalorder %s25, 1
      %p158 = por %p156, %p157
      %p160 = scmp.ne.s32.totalorder %s143, %s159
      %p161 = scmp.eq.s32.totalorder %s25, 0
      %p162 = por %p160, %p161
      %s163 = ssub.s32 %s19, %s26
      %p164 = scmp.eq.s32.totalorder %s163, 0
      %s166 = sadd.s32 %s165, 1
      %s167 = scalar_select %p164, %s165, %s166
      %p170 = pneg %p164
      %p171 = scmp.eq.s32.totalorder %s19, 1
      %p172 = por %p170, %p171
      %p173 = scmp.ne.s32.totalorder %s165, %s168
      %p174 = scmp.eq.s32.totalorder %s19, 0
      %p175 = por %p173, %p174
      %p176 = scmp.ne.s32.totalorder %s165, %s168
      %p177 = scmp.eq.s32.totalorder %s24, 1
      %p178 = por %p176, %p177
      %p179 = scmp.ne.s32.totalorder %s168, %s169
      %p180 = scmp.eq.s32.totalorder %s24, 0
      %p181 = por %p179, %p180
      %p182 = scmp.ne.s32.totalorder %s168, %s169
      %p183 = scmp.eq.s32.totalorder %s25, 1
      %p184 = por %p182, %p183
      %p186 = scmp.ne.s32.totalorder %s169, %s185
      %p187 = scmp.eq.s32.totalorder %s25, 0
      %p188 = por %p186, %p187
      %p189 = scmp.le.s32.totalorder 1, %s19
      %p190 = scmp.lt.s32.totalorder %s19, 3
      %p191 = pnand %p189, %p190
      %p192 = pneg %p191
      // Predicated region
      $region9: #{_net_forward_impl.1} parent=5 // pred_check
        _
      $region10: #{_net_forward_impl.1} parent=5 // pred_check_branch
        %194 = sbr.rel (%p191) target = $region12
      $region11: #{_net_forward_impl.1} parent=5 // pred_region
        %s195 = ssub.s32 %s19, 1
        // Predicated region
        $region13: #{_net_forward_impl.1} parent=11 // pred_check
          %p196 = pneg %p66
        $region14: #{_net_forward_impl.1} parent=11 // pred_check_branch
          %198 = sbr.rel (%p196) target = $region16
        $region15: #{_net_forward_impl.1} parent=11 // pred_region
          _
        $region16: #{_net_forward_impl.1} parent=11 // pred_fallthru
          _
        // Predicated region
        $region17: #{_net_forward_impl.1} parent=11 // pred_check
          %p199 = pneg %p87
        $region18: #{_net_forward_impl.1} parent=11 // pred_check_branch
          %201 = sbr.rel (%p199) target = $region20
        $region19: #{_net_forward_impl.1} parent=11 // pred_region
          _
        $region20: #{_net_forward_impl.1} parent=11 // pred_fallthru
          _
        // Predicated region
        $region21: #{_net_forward_impl.1} parent=11 // pred_check
          %p202 = pneg %p108
        $region22: #{_net_forward_impl.1} parent=11 // pred_check_branch
          %204 = sbr.rel (%p202) target = $region24
        $region23: #{_net_forward_impl.1} parent=11 // pred_region
          _
        $region24: #{_net_forward_impl.1} parent=11 // pred_fallthru
          _
        // Predicated region
        $region25: #{_net_forward_impl.1} parent=11 // pred_check
          %p205 = pneg %p129
        $region26: #{_net_forward_impl.1} parent=11 // pred_check_branch
          %207 = sbr.rel (%p205) target = $region28
        $region27: #{_net_forward_impl.1} parent=11 // pred_region
          _
        $region28: #{_net_forward_impl.1} parent=11 // pred_fallthru
          _
      $region12: #{_net_forward_impl.1} parent=5 // pred_fallthru
        _
      %p208 = scmp.lt.s32.totalorder %s19, 2
      // Predicated region
      $region29: #{_net_forward_impl.1} parent=5 // pred_check
        %p209 = pneg %p208
      $region30: #{_net_forward_impl.1} parent=5 // pred_check_branch
        %211 = sbr.rel (%p209) target = $region32
      $region31: #{_net_forward_impl.1} parent=5 // pred_region
        // Predicated region
        $region33: #{_net_forward_impl.1} parent=31 // pred_check
          %p212 = pneg %p39
        $region34: #{_net_forward_impl.1} parent=31 // pred_check_branch
          %214 = sbr.rel (%p212) target = $region36
        $region35: #{_net_forward_impl.1} parent=31 // pred_region
          %p215 = scmp.lt.s32.totalorder %s19, 1
          %s216 = scalar_select %p215, %s19, 1
          %s217 = smul.addr %s216, 8
          %s218 = scalar_lea.vmem %s0, %s217
        $region36: #{_net_forward_impl.1} parent=31 // pred_fallthru
          _
      $region32: #{_net_forward_impl.1} parent=5 // pred_fallthru
        _
      %p219 = scmp.le.s32.totalorder 1, %s19
      %p220 = scmp.lt.s32.totalorder %s19, 3
      %p221 = pnand %p219, %p220
      %p222 = pneg %p221
      // Predicated region
      $region37: #{_net_forward_impl.1} parent=5 // pred_check
        _
      $region38: #{_net_forward_impl.1} parent=5 // pred_check_branch
        %224 = sbr.rel (%p221) target = $region40
      $region39: #{_net_forward_impl.1} parent=5 // pred_region
        %s225 = ssub.s32 %s19, 1
        %p226 = scmp.lt.s32.totalorder %s24, 1
        %s227 = scalar_select %p226, %s24, 1
        %s228 = smul.addr %s227, 8
        %s229 = scalar_lea.vmem %s0, %s228
        %p230 = pneg %p45
        %p231 = pneg %p42
        %p232 = pneg %p66
        %p233 = pneg %p63
        %p234 = pneg %p87
        %p235 = pneg %p84
        %p236 = pneg %p108
        %p237 = pneg %p105
        %p238 = pneg %p129
        %p239 = pneg %p126
        %p240 = pneg %p155
        %p241 = pneg %p152
        %s242 = sand.u32 %s142, 1
        %s243 = scalar_lea.sflag [#allocation3], %s242
        %s244 = sand.u32 %s142, 1
        %s245 = smul.addr %s244, 8
        %s246 = scalar_lea.vmem [#allocation2], %s245
        %p247 = pneg %p181
        %p248 = pneg %p178
        %s249 = sand.u32 %s168, 1
        %s250 = scalar_lea.sflag [#allocation5], %s249
        %s251 = sand.u32 %s168, 1
        %s252 = smul.addr %s251, 32
        %s253 = scalar_lea.vmem [#allocation4], %s252
        %p254 = scmp.lt.s32.totalorder %s24, 1
        %s255 = scalar_select %p254, %s24, 1
        %s256 = smul.addr %s255, 8
        %s257 = scalar_lea.vmem %s0, %s256
        %v258 = vld [vmem:[%s257] sm:$0xff]
        %v259 = vld [vmem:[%s3] sm:$0xff]
        %v260 = vld [vmem:[%s4] sm:$0xff]
        %v261 = vld [vmem:[%s1] sm:$0xff]
        %v262 = vld [vmem:[%s1 + $0x8] sm:$0xff]
        %v263 = vld [vmem:[%s1 + $0x10] sm:$0xff]
        %v264 = vld [vmem:[%s1 + $0x18] sm:$0xff]
        %v265 = vld [vmem:[%s1 + $0x20] sm:$0xff]
        %v266 = vld [vmem:[%s1 + $0x28] sm:$0xff]
        %v267 = vld [vmem:[%s1 + $0x30] sm:$0xff]
        %v268 = vld [vmem:[%s1 + $0x38] sm:$0xff]
        %v269 = vld [vmem:[%s1 + $0x40] sm:$0xff]
        %v270 = vld [vmem:[%s1 + $0x48] sm:$0xff]
        %v271 = vld [vmem:[%s1 + $0x50] sm:$0xff]
        %v272 = vld [vmem:[%s1 + $0x58] sm:$0xff]
        %v273 = vld [vmem:[%s1 + $0x60] sm:$0xff]
        %v274 = vld [vmem:[%s1 + $0x68] sm:$0xff]
        %v275 = vld [vmem:[%s1 + $0x70] sm:$0xff]
        %v276 = vld [vmem:[%s1 + $0x78] sm:$0xff]
        %v277 = vld [vmem:[%s1 + $0x80] sm:$0xff]
        %v278 = vld [vmem:[%s1 + $0x88] sm:$0xff]
        %v279 = vld [vmem:[%s1 + $0x90] sm:$0xff]
        %v280 = vld [vmem:[%s1 + $0x98] sm:$0xff]
        %v281 = vld [vmem:[%s1 + $0xa0] sm:$0xff]
        %v282 = vld [vmem:[%s1 + $0xa8] sm:$0xff]
        %v283 = vld [vmem:[%s1 + $0xb0] sm:$0xff]
        %v284 = vld [vmem:[%s1 + $0xb8] sm:$0xff]
        %v285 = vld [vmem:[%s1 + $0xc0] sm:$0xff]
        %v286 = vld [vmem:[%s1 + $0xc8] sm:$0xff]
        %v287 = vld [vmem:[%s1 + $0xd0] sm:$0xff]
        %v288 = vld [vmem:[%s1 + $0xd8] sm:$0xff]
        %v289 = vld [vmem:[%s1 + $0xe0] sm:$0xff]
        %v290 = vld [vmem:[%s1 + $0xe8] sm:$0xff]
        %v291 = vld [vmem:[%s1 + $0xf0] sm:$0xff]
        %v292 = vld [vmem:[%s1 + $0xf8] sm:$0xff]
        %v293 = vld [vmem:[%s1 + $0x100] sm:$0xff]
        %v294 = vld [vmem:[%s1 + $0x108] sm:$0xff]
        %v295 = vld [vmem:[%s1 + $0x110] sm:$0xff]
        %v296 = vld [vmem:[%s1 + $0x118] sm:$0xff]
        %v297 = vld [vmem:[%s1 + $0x120] sm:$0xff]
        %v298 = vld [vmem:[%s1 + $0x128] sm:$0xff]
        %v299 = vld [vmem:[%s1 + $0x130] sm:$0xff]
        %v300 = vld [vmem:[%s1 + $0x138] sm:$0xff]
        %v301 = vld [vmem:[%s1 + $0x140] sm:$0xff]
        %v302 = vld [vmem:[%s1 + $0x148] sm:$0xff]
        %v303 = vld [vmem:[%s1 + $0x150] sm:$0xff]
        %v304 = vld [vmem:[%s1 + $0x158] sm:$0xff]
        %v305 = vld [vmem:[%s1 + $0x160] sm:$0xff]
        %v306 = vld [vmem:[%s1 + $0x168] sm:$0xff]
        %v307 = vld [vmem:[%s1 + $0x170] sm:$0xff]
        %v308 = vld [vmem:[%s1 + $0x178] sm:$0xff]
        %v309 = vld [vmem:[%s1 + $0x180] sm:$0xff]
        %v310 = vld [vmem:[%s1 + $0x188] sm:$0xff]
        %v311 = vld [vmem:[%s1 + $0x190] sm:$0xff]
        %v312 = vld [vmem:[%s1 + $0x198] sm:$0xff]
        %v313 = vld [vmem:[%s1 + $0x1a0] sm:$0xff]
        %v314 = vld [vmem:[%s1 + $0x1a8] sm:$0xff]
        %v315 = vld [vmem:[%s1 + $0x1b0] sm:$0xff]
        %v316 = vld [vmem:[%s1 + $0x1b8] sm:$0xff]
        %v317 = vld [vmem:[%s1 + $0x1c0] sm:$0xff]
        %v318 = vld [vmem:[%s1 + $0x1c8] sm:$0xff]
        %v319 = vld [vmem:[%s1 + $0x1d0] sm:$0xff]
        %v320 = vld [vmem:[%s1 + $0x1d8] sm:$0xff]
        %v321 = vld [vmem:[%s1 + $0x1e0] sm:$0xff]
        %v322 = vld [vmem:[%s1 + $0x1e8] sm:$0xff]
        %v323 = vld [vmem:[%s1 + $0x1f0] sm:$0xff]
        %v324 = vld [vmem:[%s1 + $0x1f8] sm:$0xff]
        %v325 = vld [vmem:[%s1 + $0x200] sm:$0xff]
        %v326 = vld [vmem:[%s1 + $0x208] sm:$0xff]
        %v327 = vld [vmem:[%s1 + $0x210] sm:$0xff]
        %v328 = vld [vmem:[%s1 + $0x218] sm:$0xff]
        %v329 = vld [vmem:[%s1 + $0x220] sm:$0xff]
        %v330 = vld [vmem:[%s1 + $0x228] sm:$0xff]
        %v331 = vld [vmem:[%s1 + $0x230] sm:$0xff]
        %v332 = vld [vmem:[%s1 + $0x238] sm:$0xff]
        %v333 = vld [vmem:[%s1 + $0x240] sm:$0xff]
        %v334 = vld [vmem:[%s1 + $0x248] sm:$0xff]
        %v335 = vld [vmem:[%s1 + $0x250] sm:$0xff]
        %v336 = vld [vmem:[%s1 + $0x258] sm:$0xff]
        %v337 = vld [vmem:[%s1 + $0x260] sm:$0xff]
        %v338 = vld [vmem:[%s1 + $0x268] sm:$0xff]
        %v339 = vld [vmem:[%s1 + $0x270] sm:$0xff]
        %v340 = vld [vmem:[%s1 + $0x278] sm:$0xff]
        %341 = vmatpush.msra.mxu0 %v336
        %342 = vmatpush.msra.mxu0 %v331
        %343 = vmatpush.msra.mxu0 %v326
        %344 = vmatpush.msra.mxu0 %v321
        %345 = vmatpush.msra.mxu0 %v316
        %346 = vmatpush.msra.mxu0 %v311
        %347 = vmatpush.msra.mxu0 %v306
        %348 = vmatpush.msra.mxu0 %v301
        %349 = vmatpush.msra.mxu0 %v296
        %350 = vmatpush.msra.mxu0 %v291
        %351 = vmatpush.msra.mxu0 %v286
        %352 = vmatpush.msra.mxu0 %v281
        %353 = vmatpush.msra.mxu0 %v276
        %354 = vmatpush.msra.mxu0 %v271
        %355 = vmatpush.msra.mxu0 %v266
        %356 = vmatpush.msra.mxu0 %v261
        %357 = vmatmul.f32.gmra.mxu0 %v258
        %v358 = vpop.f32.mrf.mxu0
        %v359 = vadd.f32 0.0, %v358
        %360 = vdwg.mxu0
        %361 = vmatpush.msra.mxu0 %v337
        %362 = vmatpush.msra.mxu0 %v332
        %363 = vmatpush.msra.mxu0 %v327
        %364 = vmatpush.msra.mxu0 %v322
        %365 = vmatpush.msra.mxu0 %v317
        %366 = vmatpush.msra.mxu0 %v312
        %367 = vmatpush.msra.mxu0 %v307
        %368 = vmatpush.msra.mxu0 %v302
        %369 = vmatpush.msra.mxu0 %v297
        %370 = vmatpush.msra.mxu0 %v292
        %371 = vmatpush.msra.mxu0 %v287
        %372 = vmatpush.msra.mxu0 %v282
        %373 = vmatpush.msra.mxu0 %v277
        %374 = vmatpush.msra.mxu0 %v272
        %375 = vmatpush.msra.mxu0 %v267
        %376 = vmatpush.msra.mxu0 %v262
        %377 = vmatmul.f32.gmra.mxu0 %v258
        %v378 = vpop.f32.mrf.mxu0
        %v379 = vadd.f32 0.0, %v378
        %380 = vdwg.mxu0
        %381 = vmatpush.msra.mxu0 %v338
        %382 = vmatpush.msra.mxu0 %v333
        %383 = vmatpush.msra.mxu0 %v328
        %384 = vmatpush.msra.mxu0 %v323
        %385 = vmatpush.msra.mxu0 %v318
        %386 = vmatpush.msra.mxu0 %v313
        %387 = vmatpush.msra.mxu0 %v308
        %388 = vmatpush.msra.mxu0 %v303
        %389 = vmatpush.msra.mxu0 %v298
        %390 = vmatpush.msra.mxu0 %v293
        %391 = vmatpush.msra.mxu0 %v288
        %392 = vmatpush.msra.mxu0 %v283
        %393 = vmatpush.msra.mxu0 %v278
        %394 = vmatpush.msra.mxu0 %v273
        %395 = vmatpush.msra.mxu0 %v268
        %396 = vmatpush.msra.mxu0 %v263
        %397 = vmatmul.f32.gmra.mxu0 %v258
        %v398 = vpop.f32.mrf.mxu0
        %v399 = vadd.f32 0.0, %v398
        %400 = vdwg.mxu0
        %401 = vmatpush.msra.mxu0 %v339
        %402 = vmatpush.msra.mxu0 %v334
        %403 = vmatpush.msra.mxu0 %v329
        %404 = vmatpush.msra.mxu0 %v324
        %405 = vmatpush.msra.mxu0 %v319
        %406 = vmatpush.msra.mxu0 %v314
        %407 = vmatpush.msra.mxu0 %v309
        %408 = vmatpush.msra.mxu0 %v304
        %409 = vmatpush.msra.mxu0 %v299
        %410 = vmatpush.msra.mxu0 %v294
        %411 = vmatpush.msra.mxu0 %v289
        %412 = vmatpush.msra.mxu0 %v284
        %413 = vmatpush.msra.mxu0 %v279
        %414 = vmatpush.msra.mxu0 %v274
        %415 = vmatpush.msra.mxu0 %v269
        %416 = vmatpush.msra.mxu0 %v264
        %417 = vmatmul.f32.gmra.mxu0 %v258
        %v418 = vpop.f32.mrf.mxu0
        %v419 = vadd.f32 0.0, %v418
        %420 = vdwg.mxu0
        %421 = vmatpush.msra.mxu0 %v340
        %422 = vmatpush.msra.mxu0 %v335
        %423 = vmatpush.msra.mxu0 %v330
        %424 = vmatpush.msra.mxu0 %v325
        %425 = vmatpush.msra.mxu0 %v320
        %426 = vmatpush.msra.mxu0 %v315
        %427 = vmatpush.msra.mxu0 %v310
        %428 = vmatpush.msra.mxu0 %v305
        %429 = vmatpush.msra.mxu0 %v300
        %430 = vmatpush.msra.mxu0 %v295
        %431 = vmatpush.msra.mxu0 %v290
        %432 = vmatpush.msra.mxu0 %v285
        %433 = vmatpush.msra.mxu0 %v280
        %434 = vmatpush.msra.mxu0 %v275
        %435 = vmatpush.msra.mxu0 %v270
        %436 = vmatpush.msra.mxu0 %v265
        %437 = vmatmul.f32.gmra.mxu0 %v258
        %v438 = vpop.f32.mrf.mxu0
        %v439 = vadd.f32 0.0, %v438
        %440 = vdwg.mxu0
        %v441 = vmul.f32 %v359, %v259
        %v442 = vmul.f32 %v379, %v260
        %v443 = vadd.f32 %v441, %v442
        %v444 = vmul.f32 %v399, %v259
        %v445 = vmul.f32 %v419, %v260
        %v446 = vadd.f32 %v444, %v445
        %vm447 = vcmask 261120
        %v449 = vsel %vm447, %v443, 0
        %v452 = vsel %vm447, %v446, 0
        %454 = vmatpush.xpose.msra.mxu0 0.0
        %455 = vmatpush.xpose.msra.mxu0 0.0
        %456 = vmatpush.xpose.msra.mxu0 0.0
        %457 = vmatpush.xpose.msra.mxu0 0.0
        %458 = vmatpush.xpose.msra.mxu0 0.0
        %459 = vmatpush.xpose.msra.mxu0 0.0
        %460 = vmatpush.xpose.msra.mxu0 0.0
        %461 = vmatpush.xpose.msra.mxu0 0.0
        %462 = vmatpush.xpose.msra.mxu0 0.0
        %463 = vmatpush.xpose.msra.mxu0 0.0
        %464 = vmatpush.xpose.msra.mxu0 0.0
        %465 = vmatpush.xpose.msra.mxu0 0.0
        %466 = vmatpush.xpose.msra.mxu0 0.0
        %467 = vmatpush.xpose.msra.mxu0 0.0
        %468 = vmatpush.xpose.msra.mxu0 0.0
        %469 = vmatpush.xpose.msra.mxu0 %v452
        %470 = vmatmul.f32.gmra.mxu0 %v449
        %v471 = vpop.f32.mrf.mxu0
        %v472 = vadd.f32 0.0, %v471
        %473 = vdwg.mxu0
        %vm474 = vcmask 64512
        %v475 = vsel %vm474, %v472, -inf
        %476 = vmax.xlane.f32.xlu0 %v475
        %v477 = vpop.xlane.xlu0 %476
        %v478 = vsub.f32 %v472, %v477
        %v479 = vmul.f32 %v478, 1.442695
        %v480 = vpow.pop %v479
        %v481 = vsel %vm474, %v480, 0.0
        %482 = vadd.xlane.f32.xlu0 %v481
        %v483 = vpop.xlane.xlu0 %482
        %v484 = vrcp.pop %v483
        %v485 = vmul.f32 %v483, %v484
        %v486 = vsub.f32 1.0, %v485
        %v487 = vmul.f32 %v484, %v486
        %v488 = vadd.f32 %v484, %v487
        %vm489 = vweird.f32 %v483
        %vm490 = vweird.f32 %v484
        %vm491 = vmor %vm489, %vm490
        %v492 = vsel %vm491, %v484, %v488
        %v493 = vand.u32 2147483647, %v483
        %vm494 = vcmp.eq.f32.partialorder %v493, 8.507059e+37
        %v495 = vand.u32 %v483, 2147483648
        %v496 = vor.u32 1.1754944e-38, %v495
        %v497 = vsel %vm494, %v496, %v492
        %v498 = vmul.f32 %v480, %v497
        %499 = vst.msk [vmem:[%s253] sm:$0xff] %vm474, %v498
        %v501 = vsel %vm474, %v498, 0
        %503 = vmatpush.msra.mxu0 0.0
        %504 = vmatpush.msra.mxu0 0.0
        %505 = vmatpush.msra.mxu0 0.0
        %506 = vmatpush.msra.mxu0 0.0
        %507 = vmatpush.msra.mxu0 0.0
        %508 = vmatpush.msra.mxu0 0.0
        %509 = vmatpush.msra.mxu0 0.0
        %510 = vmatpush.msra.mxu0 0.0
        %511 = vmatpush.msra.mxu0 0.0
        %512 = vmatpush.msra.mxu0 0.0
        %513 = vmatpush.msra.mxu0 0.0
        %514 = vmatpush.msra.mxu0 0.0
        %515 = vmatpush.msra.mxu0 0.0
        %516 = vmatpush.msra.mxu0 0.0
        %517 = vmatpush.msra.mxu0 0.0
        %518 = vmatpush.msra.mxu0 %v439
        %519 = vmatmul.f32.gmra.mxu0 %v501
        %v520 = vpop.f32.mrf.mxu0
        %v521 = vadd.f32 0.0, %v520
        %522 = vdwg.mxu0
        %v523 = vld [vmem:[%s2] sm:$0xff]
        %v524 = vld [vmem:[%s2 + $0x8] sm:$0xff]
        %v525 = vld [vmem:[%s2 + $0x10] sm:$0xff]
        %v526 = vld [vmem:[%s2 + $0x18] sm:$0xff]
        %527 = vrot.lane.b32.xlu0 %v443, 96
        %v528 = vpop.permute.xlu0 %527
        %529 = vrot.lane.b32.xlu0 %v446, 96
        %v530 = vpop.permute.xlu0 %529
        %v531 = vsel %vm447, %v528, 0
        %v533 = vsel %vm447, %v530, 0
        %535 = vmatpush.xpose.msra.mxu0 0.0
        %536 = vmatpush.xpose.msra.mxu0 0.0
        %537 = vmatpush.xpose.msra.mxu0 0.0
        %538 = vmatpush.xpose.msra.mxu0 0.0
        %539 = vmatpush.xpose.msra.mxu0 0.0
        %540 = vmatpush.xpose.msra.mxu0 0.0
        %541 = vmatpush.xpose.msra.mxu0 0.0
        %542 = vmatpush.xpose.msra.mxu0 0.0
        %543 = vmatpush.xpose.msra.mxu0 0.0
        %544 = vmatpush.xpose.msra.mxu0 0.0
        %545 = vmatpush.xpose.msra.mxu0 0.0
        %546 = vmatpush.xpose.msra.mxu0 0.0
        %547 = vmatpush.xpose.msra.mxu0 0.0
        %548 = vmatpush.xpose.msra.mxu0 0.0
        %549 = vmatpush.xpose.msra.mxu0 0.0
        %550 = vmatpush.xpose.msra.mxu0 %v533
        %551 = vmatmul.f32.gmra.mxu0 %v531
        %v552 = vpop.f32.mrf.mxu0
        %v553 = vadd.f32 0.0, %v552
        %554 = vdwg.mxu0
        %v555 = vsel %vm474, %v553, -inf
        %556 = vmax.xlane.f32.xlu0 %v555
        %v557 = vpop.xlane.xlu0 %556
        %v558 = vsub.f32 %v553, %v557
        %v559 = vmul.f32 %v558, 1.442695
        %v560 = vpow.pop %v559
        %v561 = vsel %vm474, %v560, 0.0
        %562 = vadd.xlane.f32.xlu0 %v561
        %v563 = vpop.xlane.xlu0 %562
        %v564 = vrcp.pop %v563
        %v565 = vmul.f32 %v563, %v564
        %v566 = vsub.f32 1.0, %v565
        %v567 = vmul.f32 %v564, %v566
        %v568 = vadd.f32 %v564, %v567
        %vm569 = vweird.f32 %v563
        %vm570 = vweird.f32 %v564
        %vm571 = vmor %vm569, %vm570
        %v572 = vsel %vm571, %v564, %v568
        %v573 = vand.u32 2147483647, %v563
        %vm574 = vcmp.eq.f32.partialorder %v573, 8.507059e+37
        %v575 = vand.u32 %v563, 2147483648
        %v576 = vor.u32 1.1754944e-38, %v575
        %v577 = vsel %vm574, %v576, %v572
        %v578 = vmul.f32 %v560, %v577
        %s579 = scalar_lea.vmem %s253, 8 [#allocation4]
        %580 = vst.msk [vmem:[%s579] sm:$0xff] %vm474, %v578
        %582 = vrot.lane.b32.xlu0 %v439, 96
        %v583 = vpop.permute.xlu0 %582
        %v586 = vsel %vm474, %v578, 0
        %588 = vmatpush.msra.mxu0 0.0
        %589 = vmatpush.msra.mxu0 0.0
        %590 = vmatpush.msra.mxu0 0.0
        %591 = vmatpush.msra.mxu0 0.0
        %592 = vmatpush.msra.mxu0 0.0
        %593 = vmatpush.msra.mxu0 0.0
        %594 = vmatpush.msra.mxu0 0.0
        %595 = vmatpush.msra.mxu0 0.0
        %596 = vmatpush.msra.mxu0 0.0
        %597 = vmatpush.msra.mxu0 0.0
        %598 = vmatpush.msra.mxu0 0.0
        %599 = vmatpush.msra.mxu0 0.0
        %600 = vmatpush.msra.mxu0 0.0
        %601 = vmatpush.msra.mxu0 0.0
        %602 = vmatpush.msra.mxu0 0.0
        %603 = vmatpush.msra.mxu0 %v583
        %604 = vmatmul.f32.gmra.mxu0 %v586
        %v605 = vpop.f32.mrf.mxu0
        %v606 = vadd.f32 0.0, %v605
        %607 = vdwg.mxu0
        %s608 = scalar_lea.vmem %s2, 32
        %v609 = vld [vmem:[%s608] sm:$0xff]
        %v610 = vld [vmem:[%s608 + $0x8] sm:$0xff]
        %v611 = vld [vmem:[%s608 + $0x10] sm:$0xff]
        %v612 = vld [vmem:[%s608 + $0x18] sm:$0xff]
        %v614 = vsel %vm447, %v606, 0
        %616 = vmatpush.msra.mxu0 0.0
        %617 = vmatpush.msra.mxu0 0.0
        %618 = vmatpush.msra.mxu0 0.0
        %619 = vmatpush.msra.mxu0 0.0
        %620 = vmatpush.msra.mxu0 0.0
        %621 = vmatpush.msra.mxu0 0.0
        %622 = vmatpush.msra.mxu0 0.0
        %623 = vmatpush.msra.mxu0 0.0
        %624 = vmatpush.msra.mxu0 0.0
        %625 = vmatpush.msra.mxu0 0.0
        %626 = vmatpush.msra.mxu0 0.0
        %627 = vmatpush.msra.mxu0 0.0
        %628 = vmatpush.msra.mxu0 %v612
        %629 = vmatpush.msra.mxu0 %v611
        %630 = vmatpush.msra.mxu0 %v610
        %631 = vmatpush.msra.mxu0 %v609
        %632 = vmatmul.f32.gmra.mxu0 %v614
        %v633 = vpop.f32.mrf.mxu0
        %v634 = vadd.f32 0.0, %v633
        %635 = vdwg.mxu0
        %v637 = vsel %vm447, %v521, 0
        %639 = vmatpush.msra.mxu0 0.0
        %640 = vmatpush.msra.mxu0 0.0
        %641 = vmatpush.msra.mxu0 0.0
        %642 = vmatpush.msra.mxu0 0.0
        %643 = vmatpush.msra.mxu0 0.0
        %644 = vmatpush.msra.mxu0 0.0
        %645 = vmatpush.msra.mxu0 0.0
        %646 = vmatpush.msra.mxu0 0.0
        %647 = vmatpush.msra.mxu0 0.0
        %648 = vmatpush.msra.mxu0 0.0
        %649 = vmatpush.msra.mxu0 0.0
        %650 = vmatpush.msra.mxu0 0.0
        %651 = vmatpush.msra.mxu0 %v526
        %652 = vmatpush.msra.mxu0 %v525
        %653 = vmatpush.msra.mxu0 %v524
        %654 = vmatpush.msra.mxu0 %v523
        %655 = vmatmul.f32.gmra.mxu0 %v637
        %v656 = vpop.f32.mrf.mxu0
        %v657 = vadd.f32 %v634, %v656
        %658 = vdwg.mxu0
        %659 = vrot.lane.b32.xlu0 %v443, 64
        %v660 = vpop.permute.xlu0 %659
        %661 = vrot.lane.b32.xlu0 %v446, 64
        %v662 = vpop.permute.xlu0 %661
        %v663 = vsel %vm447, %v660, 0
        %v665 = vsel %vm447, %v662, 0
        %667 = vmatpush.xpose.msra.mxu0 0.0
        %668 = vmatpush.xpose.msra.mxu0 0.0
        %669 = vmatpush.xpose.msra.mxu0 0.0
        %670 = vmatpush.xpose.msra.mxu0 0.0
        %671 = vmatpush.xpose.msra.mxu0 0.0
        %672 = vmatpush.xpose.msra.mxu0 0.0
        %673 = vmatpush.xpose.msra.mxu0 0.0
        %674 = vmatpush.xpose.msra.mxu0 0.0
        %675 = vmatpush.xpose.msra.mxu0 0.0
        %676 = vmatpush.xpose.msra.mxu0 0.0
        %677 = vmatpush.xpose.msra.mxu0 0.0
        %678 = vmatpush.xpose.msra.mxu0 0.0
        %679 = vmatpush.xpose.msra.mxu0 0.0
        %680 = vmatpush.xpose.msra.mxu0 0.0
        %681 = vmatpush.xpose.msra.mxu0 0.0
        %682 = vmatpush.xpose.msra.mxu0 %v665
        %683 = vmatmul.f32.gmra.mxu0 %v663
        %v684 = vpop.f32.mrf.mxu0
        %v685 = vadd.f32 0.0, %v684
        %686 = vdwg.mxu0
        %v687 = vsel %vm474, %v685, -inf
        %688 = vmax.xlane.f32.xlu0 %v687
        %v689 = vpop.xlane.xlu0 %688
        %v690 = vsub.f32 %v685, %v689
        %v691 = vmul.f32 %v690, 1.442695
        %v692 = vpow.pop %v691
        %v693 = vsel %vm474, %v692, 0.0
        %694 = vadd.xlane.f32.xlu0 %v693
        %v695 = vpop.xlane.xlu0 %694
        %v696 = vrcp.pop %v695
        %v697 = vmul.f32 %v695, %v696
        %v698 = vsub.f32 1.0, %v697
        %v699 = vmul.f32 %v696, %v698
        %v700 = vadd.f32 %v696, %v699
        %vm701 = vweird.f32 %v695
        %vm702 = vweird.f32 %v696
        %vm703 = vmor %vm701, %vm702
        %v704 = vsel %vm703, %v696, %v700
        %v705 = vand.u32 2147483647, %v695
        %vm706 = vcmp.eq.f32.partialorder %v705, 8.507059e+37
        %v707 = vand.u32 %v695, 2147483648
        %v708 = vor.u32 1.1754944e-38, %v707
        %v709 = vsel %vm706, %v708, %v704
        %v710 = vmul.f32 %v692, %v709
        %s711 = scalar_lea.vmem %s253, 16 [#allocation4]
        %712 = vst.msk [vmem:[%s711] sm:$0xff] %vm474, %v710
        %713 = vrot.lane.b32.xlu0 %v439, 64
        %v714 = vpop.permute.xlu0 %713
        %v717 = vsel %vm474, %v710, 0
        %719 = vmatpush.msra.mxu0 0.0
        %720 = vmatpush.msra.mxu0 0.0
        %721 = vmatpush.msra.mxu0 0.0
        %722 = vmatpush.msra.mxu0 0.0
        %723 = vmatpush.msra.mxu0 0.0
        %724 = vmatpush.msra.mxu0 0.0
        %725 = vmatpush.msra.mxu0 0.0
        %726 = vmatpush.msra.mxu0 0.0
        %727 = vmatpush.msra.mxu0 0.0
        %728 = vmatpush.msra.mxu0 0.0
        %729 = vmatpush.msra.mxu0 0.0
        %730 = vmatpush.msra.mxu0 0.0
        %731 = vmatpush.msra.mxu0 0.0
        %732 = vmatpush.msra.mxu0 0.0
        %733 = vmatpush.msra.mxu0 0.0
        %734 = vmatpush.msra.mxu0 %v714
        %735 = vmatmul.f32.gmra.mxu0 %v717
        %v736 = vpop.f32.mrf.mxu0
        %v737 = vadd.f32 0.0, %v736
        %738 = vdwg.mxu0
        %s739 = scalar_lea.vmem %s2, 64
        %v740 = vld [vmem:[%s739] sm:$0xff]
        %v741 = vld [vmem:[%s739 + $0x8] sm:$0xff]
        %v742 = vld [vmem:[%s739 + $0x10] sm:$0xff]
        %v743 = vld [vmem:[%s739 + $0x18] sm:$0xff]
        %v745 = vsel %vm447, %v737, 0
        %747 = vmatpush.msra.mxu0 0.0
        %748 = vmatpush.msra.mxu0 0.0
        %749 = vmatpush.msra.mxu0 0.0
        %750 = vmatpush.msra.mxu0 0.0
        %751 = vmatpush.msra.mxu0 0.0
        %752 = vmatpush.msra.mxu0 0.0
        %753 = vmatpush.msra.mxu0 0.0
        %754 = vmatpush.msra.mxu0 0.0
        %755 = vmatpush.msra.mxu0 0.0
        %756 = vmatpush.msra.mxu0 0.0
        %757 = vmatpush.msra.mxu0 0.0
        %758 = vmatpush.msra.mxu0 0.0
        %759 = vmatpush.msra.mxu0 %v743
        %760 = vmatpush.msra.mxu0 %v742
        %761 = vmatpush.msra.mxu0 %v741
        %762 = vmatpush.msra.mxu0 %v740
        %763 = vmatmul.f32.gmra.mxu0 %v745
        %v764 = vpop.f32.mrf.mxu0
        %v765 = vadd.f32 0.0, %v764
        %766 = vdwg.mxu0
        %v767 = vadd.f32 %v657, %v765
        %768 = vrot.lane.b32.xlu0 %v443, 32
        %v769 = vpop.permute.xlu0 %768
        %770 = vrot.lane.b32.xlu0 %v446, 32
        %v771 = vpop.permute.xlu0 %770
        %v772 = vsel %vm447, %v769, 0
        %v774 = vsel %vm447, %v771, 0
        %776 = vmatpush.xpose.msra.mxu0 0.0
        %777 = vmatpush.xpose.msra.mxu0 0.0
        %778 = vmatpush.xpose.msra.mxu0 0.0
        %779 = vmatpush.xpose.msra.mxu0 0.0
        %780 = vmatpush.xpose.msra.mxu0 0.0
        %781 = vmatpush.xpose.msra.mxu0 0.0
        %782 = vmatpush.xpose.msra.mxu0 0.0
        %783 = vmatpush.xpose.msra.mxu0 0.0
        %784 = vmatpush.xpose.msra.mxu0 0.0
        %785 = vmatpush.xpose.msra.mxu0 0.0
        %786 = vmatpush.xpose.msra.mxu0 0.0
        %787 = vmatpush.xpose.msra.mxu0 0.0
        %788 = vmatpush.xpose.msra.mxu0 0.0
        %789 = vmatpush.xpose.msra.mxu0 0.0
        %790 = vmatpush.xpose.msra.mxu0 0.0
        %791 = vmatpush.xpose.msra.mxu0 %v774
        %792 = vmatmul.f32.gmra.mxu0 %v772
        %v793 = vpop.f32.mrf.mxu0
        %v794 = vadd.f32 0.0, %v793
        %795 = vdwg.mxu0
        %v796 = vsel %vm474, %v794, -inf
        %797 = vmax.xlane.f32.xlu0 %v796
        %v798 = vpop.xlane.xlu0 %797
        %v799 = vsub.f32 %v794, %v798
        %v800 = vmul.f32 %v799, 1.442695
        %v801 = vpow.pop %v800
        %v802 = vsel %vm474, %v801, 0.0
        %803 = vadd.xlane.f32.xlu0 %v802
        %v804 = vpop.xlane.xlu0 %803
        %v805 = vrcp.pop %v804
        %v806 = vmul.f32 %v804, %v805
        %v807 = vsub.f32 1.0, %v806
        %v808 = vmul.f32 %v805, %v807
        %v809 = vadd.f32 %v805, %v808
        %vm810 = vweird.f32 %v804
        %vm811 = vweird.f32 %v805
        %vm812 = vmor %vm810, %vm811
        %v813 = vsel %vm812, %v805, %v809
        %v814 = vand.u32 2147483647, %v804
        %vm815 = vcmp.eq.f32.partialorder %v814, 8.507059e+37
        %v816 = vand.u32 %v804, 2147483648
        %v817 = vor.u32 1.1754944e-38, %v816
        %v818 = vsel %vm815, %v817, %v813
        %v819 = vmul.f32 %v801, %v818
        %s820 = scalar_lea.vmem %s253, 24 [#allocation4]
        %821 = vst.msk [vmem:[%s820] sm:$0xff] %vm474, %v819
        %822 = vrot.lane.b32.xlu0 %v439, 32
        %v823 = vpop.permute.xlu0 %822
        %v826 = vsel %vm474, %v819, 0
        %828 = vmatpush.msra.mxu0 0.0
        %829 = vmatpush.msra.mxu0 0.0
        %830 = vmatpush.msra.mxu0 0.0
        %831 = vmatpush.msra.mxu0 0.0
        %832 = vmatpush.msra.mxu0 0.0
        %833 = vmatpush.msra.mxu0 0.0
        %834 = vmatpush.msra.mxu0 0.0
        %835 = vmatpush.msra.mxu0 0.0
        %836 = vmatpush.msra.mxu0 0.0
        %837 = vmatpush.msra.mxu0 0.0
        %838 = vmatpush.msra.mxu0 0.0
        %839 = vmatpush.msra.mxu0 0.0
        %840 = vmatpush.msra.mxu0 0.0
        %841 = vmatpush.msra.mxu0 0.0
        %842 = vmatpush.msra.mxu0 0.0
        %843 = vmatpush.msra.mxu0 %v823
        %844 = vmatmul.f32.gmra.mxu0 %v826
        %v845 = vpop.f32.mrf.mxu0
        %v846 = vadd.f32 0.0, %v845
        %847 = vdwg.mxu0
        %s848 = scalar_lea.vmem %s2, 96
        %v849 = vld [vmem:[%s848] sm:$0xff]
        %v850 = vld [vmem:[%s848 + $0x8] sm:$0xff]
        %v851 = vld [vmem:[%s848 + $0x10] sm:$0xff]
        %v852 = vld [vmem:[%s848 + $0x18] sm:$0xff]
        %v854 = vsel %vm447, %v846, 0
        %856 = vmatpush.msra.mxu0 0.0
        %857 = vmatpush.msra.mxu0 0.0
        %858 = vmatpush.msra.mxu0 0.0
        %859 = vmatpush.msra.mxu0 0.0
        %860 = vmatpush.msra.mxu0 0.0
        %861 = vmatpush.msra.mxu0 0.0
        %862 = vmatpush.msra.mxu0 0.0
        %863 = vmatpush.msra.mxu0 0.0
        %864 = vmatpush.msra.mxu0 0.0
        %865 = vmatpush.msra.mxu0 0.0
        %866 = vmatpush.msra.mxu0 0.0
        %867 = vmatpush.msra.mxu0 0.0
        %868 = vmatpush.msra.mxu0 %v852
        %869 = vmatpush.msra.mxu0 %v851
        %870 = vmatpush.msra.mxu0 %v850
        %871 = vmatpush.msra.mxu0 %v849
        %872 = vmatmul.f32.gmra.mxu0 %v854
        %v873 = vpop.f32.mrf.mxu0
        %v874 = vadd.f32 0.0, %v873
        %875 = vdwg.mxu0
        %v876 = vadd.f32 %v767, %v874
        %877 = vst [vmem:[%s246] sm:$0xff] %v876
        %s878 = sand.u32 %s142, 1
        %s879 = scalar_lea.sflag [#allocation3], %s878
        %s880 = sand.u32 %s142, 1
        %s881 = smul.addr %s880, 8
        %s882 = scalar_lea.vmem [#allocation2], %s881
        %s883 = sand.u32 %s168, 1
        %s884 = scalar_lea.sflag [#allocation5], %s883
        %s885 = sand.u32 %s168, 1
        %s886 = smul.addr %s885, 32
        %s887 = scalar_lea.vmem [#allocation4], %s886
        // Predicated region
        $region41: #{_net_forward_impl.1} parent=39 // pred_check
          %p888 = pneg %p152
        $region42: #{_net_forward_impl.1} parent=39 // pred_check_branch
          %890 = sbr.rel (%p888) target = $region44
        $region43: #{_net_forward_impl.1} parent=39 // pred_region
          %892 = vsyncadd %s879, 0
          %s893 = smul.addr %s24, 8
          %s894 = scalar_lea.hbm %s5, %s893
          %s896 = sshll.u32 %s882, 4
          %s897 = int_to_ptr.vmem [resolvable:$true] %s896
          %s898 = sshll.u32 %s894, 4
          %s899 = int_to_ptr.hbm [resolvable:$true] %s898
          %901 = dma.vmem_to_hbm [thread:$0]  %s897, 128, %s899, %s879
        $region44: #{_net_forward_impl.1} parent=39 // pred_fallthru
          _
        // Predicated region
        $region45: #{_net_forward_impl.1} parent=39 // pred_check
          %p902 = pneg %p178
        $region46: #{_net_forward_impl.1} parent=39 // pred_check_branch
          %904 = sbr.rel (%p902) target = $region48
        $region47: #{_net_forward_impl.1} parent=39 // pred_region
          %906 = vsyncadd %s884, 0
          %s907 = smul.addr %s24, 4
          %s908 = smul.addr %s907, 8
          %s909 = scalar_lea.hbm %s6, %s908
          %s910 = sshll.u32 %s887, 4
          %s911 = int_to_ptr.vmem [resolvable:$true] %s910
          %s912 = sshll.u32 %s909, 4
          %s913 = int_to_ptr.hbm [resolvable:$true] %s912
          %918 = dma.vmem_to_hbm [thread:$0]  %s911, 512, %s913, %s884, 128, 128, 8
        $region48: #{_net_forward_impl.1} parent=39 // pred_fallthru
          _
      $region40: #{_net_forward_impl.1} parent=5 // pred_fallthru
        _
      %p919 = scmp.le.s32.totalorder 2, %s19
      // Predicated region
      $region49: #{_net_forward_impl.1} parent=5 // pred_check
        %p920 = pneg %p919
      $region50: #{_net_forward_impl.1} parent=5 // pred_check_branch
        %922 = sbr.rel (%p920) target = $region52
      $region51: #{_net_forward_impl.1} parent=5 // pred_region
        %s923 = ssub.s32 %s19, 2
        // Predicated region
        $region53: #{_net_forward_impl.1} parent=51 // pred_check
          %p924 = pneg %p158
        $region54: #{_net_forward_impl.1} parent=51 // pred_check_branch
          %926 = sbr.rel (%p924) target = $region56
        $region55: #{_net_forward_impl.1} parent=51 // pred_region
          %s927 = sand.u32 %s143, 1
          %s928 = scalar_lea.sflag [#allocation3], %s927
          %s929 = sand.u32 %s143, 1
          %s930 = smul.addr %s929, 8
          %s931 = scalar_lea.vmem [#allocation2], %s930
          %933 = dma.done %s928, 128
        $region56: #{_net_forward_impl.1} parent=51 // pred_fallthru
          _
        // Predicated region
        $region57: #{_net_forward_impl.1} parent=51 // pred_check
          %p934 = pneg %p184
        $region58: #{_net_forward_impl.1} parent=51 // pred_check_branch
          %936 = sbr.rel (%p934) target = $region60
        $region59: #{_net_forward_impl.1} parent=51 // pred_region
          %s937 = sand.u32 %s169, 1
          %s938 = scalar_lea.sflag [#allocation5], %s937
          %s939 = sand.u32 %s169, 1
          %s940 = smul.addr %s939, 32
          %s941 = scalar_lea.vmem [#allocation4], %s940
          %943 = dma.done %s938, 512
        $region60: #{_net_forward_impl.1} parent=51 // pred_fallthru
          _
      $region52: #{_net_forward_impl.1} parent=5 // pred_fallthru
        _
    $region6: #{_net_forward_impl.1} parent=1 // loop_footer
      %s23 = sadd.s32 1, %s19
    $region7: #{_net_forward_impl.1} parent=1 // loop_footer_branch
      %18 = sbr.rel target = $region3
    $region8: #{_net_forward_impl.1} parent=1 // loop_exit
      _
    %944 = vsyncpa [#allocation3], 1
    %s945 = scalar_lea.sflag [#allocation3], 1
    %946 = vsyncpa %s945, 1
    %947 = vsyncpa [#allocation5], 1
    %s948 = scalar_lea.sflag [#allocation5], 1
    %949 = vsyncpa %s948, 1

</llo_original>
